<compile_context>
chip_gen: v6e
topology: v6e:2x2x1
jax: 0.10.0
libtpu: 0.0.40
codegen_flags: <defaults>
</compile_context>

<pallas_src>
import functools
import math

import jax
import jax.numpy as jnp
from jax import lax
from jax.experimental import pallas as pl
from jax.experimental.pallas import tpu as pltpu


def _round_up(x, m):
    return (x + m - 1) // m * m


@functools.lru_cache(maxsize=None)
def _vmem_limit_bytes():
    """Half of physical VMEM, capped at 64 MiB (v5e/v6e -> 64 MiB, v7x -> 32 MiB)."""
    try:
        cap = int(pltpu.get_tpu_info().vmem_capacity_bytes)
    except Exception:
        return 32 * 1024 * 1024
    return int(min(cap // 2, 64 * 1024 * 1024))


def _pick_tile(full, unit, cap):
    """Largest multiple of `unit` <= cap that divides round_up(full, unit).

    Returns (tile, padded_full). Avoids padding a 768-wide K/N axis up to 1024.
    """
    padded = _round_up(full, unit)
    t = min(cap, padded)
    t -= t % unit
    while t >= unit:
        if padded % t == 0:
            return t, padded
        t -= unit
    return unit, padded


# ----------------------------------------------------------------------------
# Conv1D (rf == 1): y = x @ w + b over the last axis, optional fused gelu.
# ----------------------------------------------------------------------------
def _conv1d_kernel(x_ref, w_ref, b_ref, o_ref, acc_ref, *, activation):
    @pl.when(pl.program_id(2) == 0)
    def _():
        acc_ref[...] = jnp.zeros_like(acc_ref)

    acc_ref[...] += jnp.dot(x_ref[...], w_ref[...],
                            preferred_element_type=jnp.float32)

    @pl.when(pl.program_id(2) == pl.num_programs(2) - 1)
    def _():
        y = acc_ref[...] + b_ref[...].astype(jnp.float32)
        if activation == "gelu":
            c = math.sqrt(2.0 / math.pi)
            y = 0.5 * y * (1.0 + jnp.tanh(c * (y + 0.044715 * y * y * y)))
        o_ref[...] = y.astype(o_ref.dtype)


def conv1d(x, w, b, *, activation=None):
    """y = activation(x @ w + b).  x: (..., nx), w: (nx, nf), b: (nf,)."""
    nx, nf = w.shape
    lead = x.shape[:-1]
    x2 = x.reshape(-1, nx)
    M = x2.shape[0]

    sub = 8 if x2.dtype == jnp.float32 else 16           # sublane tile per dtype
    tm = min(512, _round_up(M, sub))                      # big, 8/16-aligned M tile
    Mp = _round_up(M, tm)
    tn, Np = _pick_tile(nf, 128, 512)                     # lane-dense, no extra N pad
    tk, Kp = _pick_tile(nx, 128, 512)                     # K tile divides padded K

    if (Mp, Kp) != (M, nx):
        x2 = jnp.pad(x2, ((0, Mp - M), (0, Kp - nx)))
    wp = w if (Kp, Np) == (nx, nf) else jnp.pad(w, ((0, Kp - nx), (0, Np - nf)))
    bp = (b if Np == nf else jnp.pad(b, (0, Np - nf))).reshape(1, Np)

    grid = (Mp // tm, Np // tn, Kp // tk)
    itemsize = x2.dtype.itemsize
    cost = pl.CostEstimate(
        flops=2 * Mp * Kp * Np,
        transcendentals=(Mp * Np if activation == "gelu" else 0),
        # x is re-streamed once per N tile, w once per M tile.
        bytes_accessed=(Mp * Kp * (Np // tn) + Kp * Np * (Mp // tm)
                        + Np + Mp * Np) * itemsize,
    )

    out = pl.pallas_call(
        functools.partial(_conv1d_kernel, activation=activation),
        out_shape=jax.ShapeDtypeStruct((Mp, Np), x.dtype),
        grid_spec=pltpu.PrefetchScalarGridSpec(
            num_scalar_prefetch=0,
            grid=grid,
            in_specs=[
                pl.BlockSpec((tm, tk), lambda i, j, k: (i, k)),   # x tile
                pl.BlockSpec((tk, tn), lambda i, j, k: (k, j)),   # weight tile
                pl.BlockSpec((1, tn), lambda i, j, k: (0, j)),    # bias tile
            ],
            out_specs=pl.BlockSpec((tm, tn), lambda i, j, k: (i, j)),
            scratch_shapes=[pltpu.VMEM((tm, tn), jnp.float32)],
        ),
        compiler_params=pltpu.CompilerParams(
            dimension_semantics=("parallel", "parallel", "arbitrary"),
            vmem_limit_bytes=_vmem_limit_bytes(),
        ),
        cost_estimate=cost,
    )(x2, wp, bp)

    return out[:M, :nf].reshape(*lead, nf)


# ----------------------------------------------------------------------------
# Attention core: reads the fused qkv tensor, writes the head-merged output.
# Heads are sliced inside the kernel (VMEM), so no HBM-level head transposes.
# ----------------------------------------------------------------------------
def _attn_kernel(qkv_ref, m_ref, o_ref, *, n_head, nx, scale):
    S = qkv_ref.shape[1]
    Dh = nx // n_head

    # Boolean (causal AND key-keep) mask, built once and reused for all heads.
    row = lax.broadcasted_iota(jnp.int32, (S, S), 0)
    col = lax.broadcasted_iota(jnp.int32, (S, S), 1)
    keep = (col <= row) & (m_ref[0] > 0)                  # (S,S) & (1,S) -> (S,S)

    inv = 1.0 / math.sqrt(Dh)
    outs = []
    for h in range(n_head):                               # static, unrolled over heads
        q = qkv_ref[0, :, h * Dh:(h + 1) * Dh]            # (S, Dh), native dtype
        k = qkv_ref[0, :, nx + h * Dh:nx + (h + 1) * Dh]
        v = qkv_ref[0, :, 2 * nx + h * Dh:2 * nx + (h + 1) * Dh]
        if scale:
            q = q * inv                                    # fold 1/sqrt(Dh) into (S,Dh)
        w = lax.dot_general(q, k, (((1,), (1,)), ((), ())),
                            preferred_element_type=jnp.float32)        # (S, S)
        w = jnp.where(keep, w, -1e9)
        w = w - jnp.max(w, axis=-1, keepdims=True)
        e = jnp.exp(w)
        p = e * pl.reciprocal(jnp.sum(e, axis=-1, keepdims=True), approx=True)
        outs.append(jnp.dot(p.astype(v.dtype), v,
                            preferred_element_type=jnp.float32))       # (S, Dh)

    # Single lane-dense, head-merged store of the whole (S, nx) slab.
    o_ref[0] = jnp.concatenate(outs, axis=-1).astype(o_ref.dtype)


def attention_core(qkv, seq_mask, *, n_head, scale):
    """qkv: (B, S, 3*nx) fused c_attn output; seq_mask: (B, S) 0/1 key keep-mask.

    Returns (B, S, nx): equivalent to split_heads -> masked softmax(QK^T) V ->
    merge_heads of the reference, without any XLA-level transposes.
    """
    B, S, three_nx = qkv.shape
    nx = three_nx // 3
    m3 = seq_mask.astype(qkv.dtype).reshape(B, 1, S)
    return pl.pallas_call(
        functools.partial(_attn_kernel, n_head=n_head, nx=nx, scale=scale),
        out_shape=jax.ShapeDtypeStruct((B, S, nx), qkv.dtype),
        grid_spec=pltpu.PrefetchScalarGridSpec(
            num_scalar_prefetch=0,
            grid=(B,),
            in_specs=[
                pl.BlockSpec((1, S, three_nx), lambda b: (b, 0, 0)),
                pl.BlockSpec((1, 1, S), lambda b: (b, 0, 0)),
            ],
            out_specs=pl.BlockSpec((1, S, nx), lambda b: (b, 0, 0)),
        ),
        compiler_params=pltpu.CompilerParams(
            dimension_semantics=("parallel",),
            vmem_limit_bytes=_vmem_limit_bytes(),
        ),
    )(qkv, m3)


# ----------------------------------------------------------------------------
# Fused residual add + LayerNorm:  out = g * norm(x + r) + b
# ----------------------------------------------------------------------------
def _add_ln_kernel(x_ref, r_ref, g_ref, b_ref, o_ref, *, eps):
    s = x_ref[...].astype(jnp.float32) + r_ref[...].astype(jnp.float32)
    u = jnp.mean(s, axis=-1, keepdims=True)
    d = s - u
    var = jnp.mean(d * d, axis=-1, keepdims=True)
    y = d * lax.rsqrt(var + eps)
    o_ref[...] = (g_ref[...].astype(jnp.float32) * y
                  + b_ref[...].astype(jnp.float32)).astype(o_ref.dtype)


def add_layernorm(x, r, g, b, *, eps=1e-5):
    D = x.shape[-1]
    lead = x.shape[:-1]
    x2 = x.reshape(-1, D)
    r2 = r.reshape(-1, D)
    M = x2.shape[0]

    sub = 8 if x2.dtype == jnp.float32 else 16
    tm = min(512, _round_up(M, sub))                      # big row tile: HBM-BW bound
    Mp = _round_up(M, tm)
    if Mp != M:
        x2 = jnp.pad(x2, ((0, Mp - M), (0, 0)))
        r2 = jnp.pad(r2, ((0, Mp - M), (0, 0)))
    g2 = g.reshape(1, D)
    b2 = b.reshape(1, D)

    out = pl.pallas_call(
        functools.partial(_add_ln_kernel, eps=eps),
        out_shape=jax.ShapeDtypeStruct((Mp, D), x.dtype),
        grid_spec=pltpu.PrefetchScalarGridSpec(
            num_scalar_prefetch=0,
            grid=(Mp // tm,),
            in_specs=[
                pl.BlockSpec((tm, D), lambda i: (i, 0)),
                pl.BlockSpec((tm, D), lambda i: (i, 0)),
                pl.BlockSpec((1, D), lambda i: (0, 0)),
                pl.BlockSpec((1, D), lambda i: (0, 0)),
            ],
            out_specs=pl.BlockSpec((tm, D), lambda i: (i, 0)),
        ),
        compiler_params=pltpu.CompilerParams(
            dimension_semantics=("parallel",),
            vmem_limit_bytes=_vmem_limit_bytes(),
        ),
    )(x2, r2, g2, b2)

    return out[:M].reshape(*lead, D)


# ----------------------------------------------------------------------------
# Block forward (glue in plain JAX; all heavy lifting in the kernels above).
# ----------------------------------------------------------------------------
def block_forward(params, x, seq_mask, *, n_head, scale=False):
    # --- Attention ---
    qkv = conv1d(x, params["c_attn_w"], params["c_attn_b"])         # (B, S, 3*nx)
    a = attention_core(qkv, seq_mask, n_head=n_head, scale=scale)   # (B, S, nx)
    a = conv1d(a, params["c_proj_w"], params["c_proj_b"])

    # --- LN1 (fused residual add) ---
    n = add_layernorm(x, a, params["ln1_g"], params["ln1_b"])

    # --- MLP (gelu fused into c_fc epilogue) ---
    h1 = conv1d(n, params["mlp_fc_w"], params["mlp_fc_b"], activation="gelu")
    m = conv1d(h1, params["mlp_proj_w"], params["mlp_proj_b"])

    # --- LN2 (fused residual add) ---
    return add_layernorm(n, m, params["ln2_g"], params["ln2_b"])


# ----------------------------------------------------------------------------
# Pure-JAX reference (mirrors the PyTorch module) for correctness checking.
# ----------------------------------------------------------------------------
def _gelu_ref(x):
    return 0.5 * x * (1 + jnp.tanh(math.sqrt(2 / math.pi) * (x + 0.044715 * x ** 3)))


def _ln_ref(x, g, b, e=1e-5):
    u = x.mean(-1, keepdims=True)
    s = ((x - u) ** 2).mean(-1, keepdims=True)
    return g * (x - u) / jnp.sqrt(s + e) + b


def block_ref(params, x, seq_mask, *, n_head, scale=False):
    def c(t, w, b):
        return jnp.einsum("...k,kn->...n", t, w) + b

    B, S, nx = x.shape
    Dh = nx // n_head
    qkv = c(x, params["c_attn_w"], params["c_attn_b"])
    q, k, v = jnp.split(qkv, 3, axis=-1)
    q = q.reshape(B, S, n_head, Dh).transpose(0, 2, 1, 3)
    k = k.reshape(B, S, n_head, Dh).transpose(0, 2, 3, 1)
    v = v.reshape(B, S, n_head, Dh).transpose(0, 2, 1, 3)
    w = jnp.matmul(q, k)
    if scale:
        w = w / math.sqrt(Dh)
    causal = jnp.tril(jnp.ones((S, S), dtype=x.dtype))
    bmask = causal[None, None] * seq_mask[:, None, None, :]
    w = w * bmask + (-1e9) * (1 - bmask)
    w = jax.nn.softmax(w, axis=-1)
    a = jnp.matmul(w, v).transpose(0, 2, 1, 3).reshape(B, S, nx)
    a = c(a, params["c_proj_w"], params["c_proj_b"])
    n = _ln_ref(x + a, params["ln1_g"], params["ln1_b"])
    m = c(_gelu_ref(c(n, params["mlp_fc_w"], params["mlp_fc_b"])),
          params["mlp_proj_w"], params["mlp_proj_b"])
    return _ln_ref(n + m, params["ln2_g"], params["ln2_b"])


if __name__ == "__main__":
    key = jax.random.PRNGKey(0)
    keys = jax.random.split(key, 8)

    batch, seq, nx, n_head = 2, 8, 32, 4
    scale = True

    def init_w(k, shape):
        return jax.random.normal(k, shape, dtype=jnp.float32) * 0.02

    params = {
        "c_attn_w": init_w(keys[0], (nx, 3 * nx)),
        "c_attn_b": jnp.zeros((3 * nx,), jnp.float32),
        "c_proj_w": init_w(keys[1], (nx, nx)),
        "c_proj_b": jnp.zeros((nx,), jnp.float32),
        "ln1_g": jnp.ones((nx,), jnp.float32),
        "ln1_b": jnp.zeros((nx,), jnp.float32),
        "mlp_fc_w": init_w(keys[2], (nx, 4 * nx)),
        "mlp_fc_b": jnp.zeros((4 * nx,), jnp.float32),
        "mlp_proj_w": init_w(keys[3], (4 * nx, nx)),
        "mlp_proj_b": jnp.zeros((nx,), jnp.float32),
        "ln2_g": jnp.ones((nx,), jnp.float32),
        "ln2_b": jnp.zeros((nx,), jnp.float32),
    }

    x = jax.random.normal(keys[4], (batch, seq, nx), dtype=jnp.float32)
    lengths = jnp.array([seq, seq - 2])
    seq_mask = (jnp.arange(seq)[None, :] < lengths[:, None]).astype(jnp.float32)

    h = block_forward(params, x, seq_mask, n_head=n_head, scale=scale)
    h = jax.block_until_ready(h)

    h_ref = block_ref(params, x, seq_mask, n_head=n_head, scale=scale)
    assert h.shape == (batch, seq, nx)
    assert jnp.allclose(h, h_ref, atol=2e-3, rtol=2e-3), "mismatch vs reference"

    print("KERNEL_OK")
</pallas_src>

<mosaic_0001>
module attributes {stable_mosaic.version = 11 : i64} {
  func.func @_conv1d_kernel(%arg0: i32, %arg1: i32, %arg2: i32, %arg3: memref<16x128xf32, #tpu.memory_space<vmem>>, %arg4: memref<128x128xf32, #tpu.memory_space<vmem>>, %arg5: memref<1x128xf32, #tpu.memory_space<vmem>>, %arg6: memref<16x128xf32, #tpu.memory_space<vmem>>, %arg7: memref<16x128xf32, #tpu.memory_space<vmem>>) attributes {dimension_semantics = [#tpu.dimension_semantics<parallel>, #tpu.dimension_semantics<parallel>, #tpu.dimension_semantics<arbitrary>], iteration_bounds = array<i64: 1, 1, 1>, scalar_prefetch = 0 : i64, scratch_operands = 1 : i64, tpu.core_type = #tpu.core_type<tc>, window_params = [{transform_indices = @transform_0, window_bounds = array<i64: 16, 128>}, {transform_indices = @transform_1, window_bounds = array<i64: 128, 128>}, {transform_indices = @transform_2, window_bounds = array<i64: 1, 128>}, {transform_indices = @transform_3, window_bounds = array<i64: 16, 128>}]} {
    %c0_i32 = arith.constant 0 : i32
    %0 = arith.cmpi eq, %arg2, %c0_i32 : i32
    %1 = arith.extui %0 : i1 to i32
    %c0_i32_0 = arith.constant 0 : i32
    %2 = arith.cmpi ne, %1, %c0_i32_0 : i32
    scf.if %2 {
      %cst_10 = arith.constant 0.000000e+00 : f32
      %12 = vector.broadcast %cst_10 : f32 to vector<16x128xf32>
      %c0_11 = arith.constant 0 : index
      %c0_12 = arith.constant 0 : index
      %13 = vector.load %arg7[%c0_11, %c0_12] : memref<16x128xf32, #tpu.memory_space<vmem>>, vector<16x128xf32>
      tpu.vector_store %arg7[%c0_11, %c0_12], %12 {strides = array<i32>} : memref<16x128xf32, #tpu.memory_space<vmem>>, vector<16x128xf32>,
    } else {
    }
    %c0 = arith.constant 0 : index
    %c0_1 = arith.constant 0 : index
    %3 = vector.load %arg7[%c0, %c0_1] : memref<16x128xf32, #tpu.memory_space<vmem>>, vector<16x128xf32>
    %c0_2 = arith.constant 0 : index
    %c0_3 = arith.constant 0 : index
    %4 = vector.load %arg3[%c0_2, %c0_3] : memref<16x128xf32, #tpu.memory_space<vmem>>, vector<16x128xf32>
    %c0_4 = arith.constant 0 : index
    %c0_5 = arith.constant 0 : index
    %5 = vector.load %arg4[%c0_4, %c0_5] : memref<128x128xf32, #tpu.memory_space<vmem>>, vector<128x128xf32>
    %cst = arith.constant dense<0.000000e+00> : vector<16x128xf32>
    %6 = tpu.matmul %4, %5, %cst {dimension_numbers = #tpu.dot_dimension_numbers<[1], [0], [0], [1], [0, 0, 1, 1], [], []>} : vector<16x128xf32>, vector<128x128xf32>, vector<16x128xf32> -> vector<16x128xf32>
    %7 = arith.addf %3, %6 : vector<16x128xf32>
    %c0_6 = arith.constant 0 : index
    %c0_7 = arith.constant 0 : index
    %8 = vector.load %arg7[%c0_6, %c0_7] : memref<16x128xf32, #tpu.memory_space<vmem>>, vector<16x128xf32>
    tpu.vector_store %arg7[%c0_6, %c0_7], %7 {strides = array<i32>} : memref<16x128xf32, #tpu.memory_space<vmem>>, vector<16x128xf32>,
    %c0_i32_8 = arith.constant 0 : i32
    %9 = arith.cmpi eq, %arg2, %c0_i32_8 : i32
    %10 = arith.extui %9 : i1 to i32
    %c0_i32_9 = arith.constant 0 : i32
    %11 = arith.cmpi ne, %10, %c0_i32_9 : i32
    scf.if %11 {
      %c0_10 = arith.constant 0 : index
      %c0_11 = arith.constant 0 : index
      %12 = vector.load %arg7[%c0_10, %c0_11] : memref<16x128xf32, #tpu.memory_space<vmem>>, vector<16x128xf32>
      %c0_12 = arith.constant 0 : index
      %c0_13 = arith.constant 0 : index
      %13 = vector.load %arg5[%c0_12, %c0_13] : memref<1x128xf32, #tpu.memory_space<vmem>>, vector<1x128xf32>
      %14 = vector.broadcast %13 : vector<1x128xf32> to vector<16x128xf32>
      %15 = arith.addf %12, %14 : vector<16x128xf32>
      %c0_14 = arith.constant 0 : index
      %c0_15 = arith.constant 0 : index
      %16 = vector.load %arg6[%c0_14, %c0_15] : memref<16x128xf32, #tpu.memory_space<vmem>>, vector<16x128xf32>
      tpu.vector_store %arg6[%c0_14, %c0_15], %15 {strides = array<i32>} : memref<16x128xf32, #tpu.memory_space<vmem>>, vector<16x128xf32>,
    } else {
    }
    return
  }
  func.func @transform_0(%arg0: i32, %arg1: i32, %arg2: i32) -> (i32, i32) {
    %c0_i32 = arith.constant 0 : i32
    return %arg0, %arg2 : i32, i32
  }
  func.func @transform_1(%arg0: i32, %arg1: i32, %arg2: i32) -> (i32, i32) {
    %c0_i32 = arith.constant 0 : i32
    return %arg2, %arg1 : i32, i32
  }
  func.func @transform_2(%arg0: i32, %arg1: i32, %arg2: i32) -> (i32, i32) {
    %c0_i32 = arith.constant 0 : i32
    %c0_i32_0 = arith.constant 0 : i32
    return %c0_i32, %arg1 : i32, i32
  }
  func.func @transform_3(%arg0: i32, %arg1: i32, %arg2: i32) -> (i32, i32) {
    %c0_i32 = arith.constant 0 : i32
    return %arg0, %arg1 : i32, i32
  }
}

</mosaic_0001>

<llo_original>
// kernel: tpu_custom_call.1
$region0: #{tpu_custom_call.1}
  #allocation0 [shape = 'u32[]', space=smem, size = 0x4, offset = 0x4, fixed_abs, tag = 'smem constant byte address 0x4 - core index']
  #allocation1 [shape = 'u32[144,128]{1,0:T(1,128)}', space=vmem, size = 0x12000, scoped, tag = 'internal scratch']
  #allocation2 [shape = 'f32[16,128]{1,0:T(8,128)}', space=vmem, size = 0x2000, scoped, tag = 'scratch operand']
  %s0 = inlined_call_operand.hbm [shape: f32[16,128], index: 0, kind: input, shape index: {}]
  %s1 = inlined_call_operand.hbm [shape: f32[128,128], index: 1, kind: input, shape index: {}]
  %s2 = inlined_call_operand.vmem [shape: f32[1,128], index: 2, kind: input, shape index: {}]
  %s3 = inlined_call_operand.hbm [shape: f32[16,128], index: 3, kind: output, shape index: {}]
  %s4 = sld [smem:[#allocation0]]
  $region38: #{tpu_custom_call.1} parent=0
    _
  %s6 = ssub.s32 1, %s4
  %s7 = scalar_select 0, %s6, %s4
  $region1: #{tpu_custom_call.1} parent=0
    #allocation3 [shape = 'u8[8192]{0}', space=vmem, size = 0x2000, scoped, tag = 'input window, operand 0, single buffered']
    #allocation4 [shape = 's32[1]{0}', space=sflag, size = 0x4, scoped, tag = 'scoped memory for tpu_custom_call.1']
    #allocation5 [shape = 's32[1]{0}', space=sflag, size = 0x4, scoped, tag = 'scoped memory for tpu_custom_call.1']
    #allocation6 [shape = 'u8[65536]{0}', space=vmem, size = 0x10000, scoped, tag = 'input window, operand 1, single buffered']
    #allocation7 [shape = 's32[1]{0}', space=sflag, size = 0x4, scoped, tag = 'scoped memory for tpu_custom_call.1']
    #allocation8 [shape = 'u8[8192]{0}', space=vmem, size = 0x2000, scoped, tag = 'output window, operand 0, single buffered']
    %8 = vsyncpa [#allocation4], 0
    %9 = vsyncpa [#allocation7], 0
    %10 = vsyncpa [#allocation5], 0
    // Predicated region
    $region2: #{tpu_custom_call.1} parent=1 // pred_check
      _
    $region3: #{tpu_custom_call.1} parent=1 // pred_check_branch
      %12 = sbr.rel (0) target = $region5
    $region4: #{tpu_custom_call.1} parent=1 // pred_region
      %s14 = ssub.s32 256, 256
      %15 = vsyncadd [#allocation4], %s14
      %s16 = sshll.u32 [#allocation3], 4
      %s17 = int_to_ptr.vmem [resolvable:$true] %s16
      %22 = dma.hbm_to_vmem [thread:$0]  %s0, 256, %s17, [#allocation4], 128, 128, 8
    $region5: #{tpu_custom_call.1} parent=1 // pred_fallthru
      _
    // Predicated region
    $region6: #{tpu_custom_call.1} parent=1 // pred_check
      _
    $region7: #{tpu_custom_call.1} parent=1 // pred_check_branch
      %24 = sbr.rel (0) target = $region9
    $region8: #{tpu_custom_call.1} parent=1 // pred_region
      %s26 = ssub.s32 2048, 2048
      %27 = vsyncadd [#allocation7], %s26
      %s28 = sshll.u32 [#allocation6], 4
      %s29 = int_to_ptr.vmem [resolvable:$true] %s28
      %34 = dma.hbm_to_vmem [thread:$0]  %s1, 2048, %s29, [#allocation7], 128, 128, 8
    $region9: #{tpu_custom_call.1} parent=1 // pred_fallthru
      _
    // Predicated region
    $region10: #{tpu_custom_call.1} parent=1 // pred_check
      _
    $region11: #{tpu_custom_call.1} parent=1 // pred_check_branch
      %36 = sbr.rel (0) target = $region13
    $region12: #{tpu_custom_call.1} parent=1 // pred_region
      _
    $region13: #{tpu_custom_call.1} parent=1 // pred_fallthru
      _
    // Predicated region
    $region14: #{tpu_custom_call.1} parent=1 // pred_check
      _
    $region15: #{tpu_custom_call.1} parent=1 // pred_check_branch
      %38 = sbr.rel (0) target = $region17
    $region16: #{tpu_custom_call.1} parent=1 // pred_region
      %39 = dma.done [#allocation4], 256
    $region17: #{tpu_custom_call.1} parent=1 // pred_fallthru
      _
    // Predicated region
    $region18: #{tpu_custom_call.1} parent=1 // pred_check
      _
    $region19: #{tpu_custom_call.1} parent=1 // pred_check_branch
      %41 = sbr.rel (0) target = $region21
    $region20: #{tpu_custom_call.1} parent=1 // pred_region
      %42 = dma.done [#allocation7], 2048
    $region21: #{tpu_custom_call.1} parent=1 // pred_fallthru
      _
    %p43 = scmp.eq.s32.totalorder 0, 0
    // Predicated region
    $region22: #{tpu_custom_call.1} parent=1 // pred_check
      %p44 = pneg %p43
    $region23: #{tpu_custom_call.1} parent=1 // pred_check_branch
      %46 = sbr.rel (%p44) target = $region25
    $region24: #{tpu_custom_call.1} parent=1 // pred_region
      %47 = vst [vmem:[#allocation2] sm:$0xff] 0.0
      %48 = vst [vmem:[#allocation2 + $0x8] sm:$0xff] 0.0
    $region25: #{tpu_custom_call.1} parent=1 // pred_fallthru
      _
    %v49 = vld [vmem:[#allocation2] sm:$0xff]
    %v50 = vld [vmem:[#allocation2 + $0x8] sm:$0xff]
    %v51 = vld [vmem:[#allocation3] sm:$0xff]
    %v52 = vld [vmem:[#allocation3 + $0x8] sm:$0xff]
    %v53 = vld [vmem:[#allocation6] sm:$0xff]
    %v54 = vld [vmem:[#allocation6 + $0x8] sm:$0xff]
    %v55 = vld [vmem:[#allocation6 + $0x10] sm:$0xff]
    %v56 = vld [vmem:[#allocation6 + $0x18] sm:$0xff]
    %v57 = vld [vmem:[#allocation6 + $0x20] sm:$0xff]
    %v58 = vld [vmem:[#allocation6 + $0x28] sm:$0xff]
    %v59 = vld [vmem:[#allocation6 + $0x30] sm:$0xff]
    %v60 = vld [vmem:[#allocation6 + $0x38] sm:$0xff]
    %v61 = vld [vmem:[#allocation6 + $0x40] sm:$0xff]
    %v62 = vld [vmem:[#allocation6 + $0x48] sm:$0xff]
    %v63 = vld [vmem:[#allocation6 + $0x50] sm:$0xff]
    %v64 = vld [vmem:[#allocation6 + $0x58] sm:$0xff]
    %v65 = vld [vmem:[#allocation6 + $0x60] sm:$0xff]
    %v66 = vld [vmem:[#allocation6 + $0x68] sm:$0xff]
    %v67 = vld [vmem:[#allocation6 + $0x70] sm:$0xff]
    %v68 = vld [vmem:[#allocation6 + $0x78] sm:$0xff]
    %69 = vmatprep.subr.mxu0 0.0
    %70 = vmatpush1.msra.mxu0 %v68
    %71 = vmatprep.subr.mxu0 0.0
    %72 = vmatpush1.msra.mxu0 %v67
    %73 = vmatprep.subr.mxu0 0.0
    %74 = vmatpush1.msra.mxu0 %v66
    %75 = vmatprep.subr.mxu0 0.0
    %76 = vmatpush1.msra.mxu0 %v65
    %77 = vmatprep.subr.mxu0 0.0
    %78 = vmatpush1.msra.mxu0 %v64
    %79 = vmatprep.subr.mxu0 0.0
    %80 = vmatpush1.msra.mxu0 %v63
    %81 = vmatprep.subr.mxu0 0.0
    %82 = vmatpush1.msra.mxu0 %v62
    %83 = vmatprep.subr.mxu0 0.0
    %84 = vmatpush1.msra.mxu0 %v61
    %85 = vmatprep.subr.mxu0 0.0
    %86 = vmatpush1.msra.mxu0 %v60
    %87 = vmatprep.subr.mxu0 0.0
    %88 = vmatpush1.msra.mxu0 %v59
    %89 = vmatprep.subr.mxu0 0.0
    %90 = vmatpush1.msra.mxu0 %v58
    %91 = vmatprep.subr.mxu0 0.0
    %92 = vmatpush1.msra.mxu0 %v57
    %93 = vmatprep.subr.mxu0 0.0
    %94 = vmatpush1.msra.mxu0 %v56
    %95 = vmatprep.subr.mxu0 0.0
    %96 = vmatpush1.msra.mxu0 %v55
    %97 = vmatprep.subr.mxu0 0.0
    %98 = vmatpush1.msra.mxu0 %v54
    %99 = vmatprep.subr.mxu0 0.0
    %100 = vmatpush1.msra.mxu0 %v53
    %101 = vmatprep.subr.mxu0 0.0
    %102 = vmatpush2.msra.mxu0 0.0
    %103 = vmatprep.subr.mxu0 0.0
    %104 = vmatpush2.msra.mxu0 0.0
    %105 = vmatprep.subr.mxu0 0.0
    %106 = vmatpush2.msra.mxu0 0.0
    %107 = vmatprep.subr.mxu0 0.0
    %108 = vmatpush2.msra.mxu0 0.0
    %109 = vmatprep.subr.mxu0 0.0
    %110 = vmatpush2.msra.mxu0 0.0
    %111 = vmatprep.subr.mxu0 0.0
    %112 = vmatpush2.msra.mxu0 0.0
    %113 = vmatprep.subr.mxu0 0.0
    %114 = vmatpush2.msra.mxu0 0.0
    %115 = vmatprep.subr.mxu0 0.0
    %116 = vmatpush2.msra.mxu0 0.0
    %117 = vmatprep.subr.mxu0 0.0
    %118 = vmatpush2.msra.mxu0 0.0
    %119 = vmatprep.subr.mxu0 0.0
    %120 = vmatpush2.msra.mxu0 0.0
    %121 = vmatprep.subr.mxu0 0.0
    %122 = vmatpush2.msra.mxu0 0.0
    %123 = vmatprep.subr.mxu0 0.0
    %124 = vmatpush2.msra.mxu0 0.0
    %125 = vmatprep.subr.mxu0 0.0
    %126 = vmatpush2.msra.mxu0 0.0
    %127 = vmatprep.subr.mxu0 0.0
    %128 = vmatpush2.msra.mxu0 0.0
    %129 = vmatprep.subr.mxu0 0.0
    %130 = vmatpush2.msra.mxu0 0.0
    %131 = vmatprep.subr.mxu0 0.0
    %132 = vmatpush2.msra.mxu0 0.0
    %133 = vmatprep.mubr.f32.mxu0 0.0
    %134 = vmatmul.mubr.f32.gmra.mxu0 %v51
    %v135 = vpop.f32.mrf.mxu0
    %v136 = vadd.f32 0.0, %v135
    %v137 = vpop.f32.mrf.mxu0
    %138 = vmatprep.mubr.f32.mxu0 0.0
    %139 = vmatmul.mubr.f32.gmra.mxu0 %v52
    %v140 = vpop.f32.mrf.mxu0
    %v141 = vadd.f32 0.0, %v140
    %v142 = vpop.f32.mrf.mxu0
    %143 = vdwg.mxu0
    %v144 = vadd.f32 %v49, %v136
    %v145 = vadd.f32 %v50, %v141
    %146 = vst [vmem:[#allocation2] sm:$0xff] %v144
    %147 = vst [vmem:[#allocation2 + $0x8] sm:$0xff] %v145
    // Predicated region
    $region26: #{tpu_custom_call.1} parent=1 // pred_check
      %p148 = pneg %p43
    $region27: #{tpu_custom_call.1} parent=1 // pred_check_branch
      %150 = sbr.rel (%p148) target = $region29
    $region28: #{tpu_custom_call.1} parent=1 // pred_region
      %v151 = vld [vmem:[#allocation2] sm:$0xff]
      %v152 = vld [vmem:[#allocation2 + $0x8] sm:$0xff]
      %v153 = vld [vmem:[%s2] sm:$0x1]
      %v155 = vlaneseq
      %v156 = vshrl.u32 %v155, 7
      %v157 = vsub.s32 0, %v156
      %v158 = vrot.slane %v153, %v157
      %v160 = vadd.f32 %v151, %v158
      %v161 = vadd.f32 %v152, %v158
      %162 = vst [vmem:[#allocation8] sm:$0xff] %v160
      %163 = vst [vmem:[#allocation8 + $0x8] sm:$0xff] %v161
    $region29: #{tpu_custom_call.1} parent=1 // pred_fallthru
      _
    // Predicated region
    $region30: #{tpu_custom_call.1} parent=1 // pred_check
      _
    $region31: #{tpu_custom_call.1} parent=1 // pred_check_branch
      %165 = sbr.rel (0) target = $region33
    $region32: #{tpu_custom_call.1} parent=1 // pred_region
      %s167 = ssub.s32 256, 256
      %168 = vsyncadd [#allocation5], %s167
      %s169 = sshll.u32 [#allocation8], 4
      %s170 = int_to_ptr.vmem [resolvable:$true] %s169
      %175 = dma.vmem_to_hbm [thread:$0]  %s170, 256, %s3, [#allocation5], 128, 128, 8
    $region33: #{tpu_custom_call.1} parent=1 // pred_fallthru
      _
    // Predicated region
    $region34: #{tpu_custom_call.1} parent=1 // pred_check
      _
    $region35: #{tpu_custom_call.1} parent=1 // pred_check_branch
      %177 = sbr.rel (0) target = $region37
    $region36: #{tpu_custom_call.1} parent=1 // pred_region
      %178 = dma.done [#allocation5], 256
    $region37: #{tpu_custom_call.1} parent=1 // pred_fallthru
      _
    %179 = vsyncpa [#allocation4], 1
    %180 = vsyncpa [#allocation7], 1
    %181 = vsyncpa [#allocation5], 1

</llo_original>
